<compile_context>
chip_gen: v7x
topology: tpu7x:2x2x1
jax: 0.10.0
libtpu: 0.0.40
codegen_flags: <defaults>
</compile_context>

<pallas_src>
import jax
import jax.numpy as jnp
from jax.experimental import pallas as pl
from jax.experimental.pallas import tpu as pltpu


def _round_up(x, m):
    return ((x + m - 1) // m) * m


def _ffn_kernel(x_ref, w1_ref, b1_ref, w2_ref, b2_ref, g_ref, beta_ref,
                o_ref, acc_ref):
    # Grid: (row tiles, d_ff chunks).  x/out/acc are resident across the
    # d_ff ("arbitrary") axis; W1/W2/b1 slices stream per chunk.
    j = pl.program_id(1)

    @pl.when(j == 0)
    def _():
        acc_ref[...] = jnp.zeros_like(acc_ref)

    # Hot path: two MXU matmuls on this d_ff chunk, f32 accumulation.
    # Inputs are fed in their native dtype (no up-front f32 cast of x).
    x = x_ref[...]
    h = jnp.dot(x, w1_ref[...], preferred_element_type=jnp.float32)
    h = jnp.maximum(h + b1_ref[...].astype(jnp.float32), 0.0)
    acc_ref[...] += jnp.dot(h.astype(w2_ref.dtype), w2_ref[...],
                            preferred_element_type=jnp.float32)

    # Epilogue on the last chunk: bias + residual + LayerNorm, all in f32.
    @pl.when(j == pl.num_programs(1) - 1)
    def _():
        y = acc_ref[...] + b2_ref[...].astype(jnp.float32)
        z = x_ref[...].astype(jnp.float32) + y
        mean = jnp.mean(z, axis=-1, keepdims=True)
        centered = z - mean
        var = jnp.mean(centered * centered, axis=-1, keepdims=True)
        zn = centered * jax.lax.rsqrt(var + 1e-5)   # eps matches nn.LayerNorm
        o_ref[...] = (zn * g_ref[...].astype(jnp.float32)
                      + beta_ref[...].astype(jnp.float32)).astype(o_ref.dtype)


def ffn_pallas(x, w1, b1, w2, b2, gamma, beta, masks=None, lengths=None, *,
               tm=256, ff_chunk=1024, vmem_limit_bytes=48 * 1024 * 1024):
    """x: (B, T, d).  Returns (B, T, d) = LayerNorm(x + FFN(x)).

    masks / lengths are unused by the forward pass (API parity with PyTorch).
    tm / ff_chunk are tunable per generation (e.g. tm=128 on v5e, smaller
    ff_chunk on v7x's 64 MiB VMEM).
    """
    B, T, d = x.shape
    d_ff = w1.shape[1]
    rows = B * T

    # Row tile: clamp to the (sublane-rounded) row count, keep multiple of 8.
    tm = max(8, min(tm, _round_up(rows, 8)))
    rows_p = _round_up(rows, tm)

    # d_ff chunk: clamp and pad d_ff so the chunk divides it.  Zero-padded W1
    # columns / b1 entries / W2 rows contribute exactly 0 after ReLU, so
    # padding is numerically exact.
    ff_chunk = min(ff_chunk, d_ff)
    d_ff_p = _round_up(d_ff, ff_chunk)

    x2 = x.reshape(rows, d)
    if rows_p != rows:
        x2 = jnp.pad(x2, ((0, rows_p - rows), (0, 0)))
    if d_ff_p != d_ff:
        w1 = jnp.pad(w1, ((0, 0), (0, d_ff_p - d_ff)))
        b1 = jnp.pad(b1, ((0, d_ff_p - d_ff),))
        w2 = jnp.pad(w2, ((0, d_ff_p - d_ff), (0, 0)))

    b1_2 = b1.reshape(1, d_ff_p)
    b2_2 = b2.reshape(1, d)
    g2 = gamma.reshape(1, d)
    be2 = beta.reshape(1, d)

    n_row = rows_p // tm
    n_ff = d_ff_p // ff_chunk

    # Advisory cost estimate so XLA schedules around this (large) custom call.
    flops = 4 * rows_p * d * d_ff_p  # two matmuls, 2 flops per MAC
    bytes_accessed = (
        x2.size * x2.dtype.itemsize
        + w1.size * w1.dtype.itemsize
        + w2.size * w2.dtype.itemsize
        + b1_2.size * b1_2.dtype.itemsize
        + b2_2.size * b2_2.dtype.itemsize
        + g2.size * g2.dtype.itemsize
        + be2.size * be2.dtype.itemsize
        + rows_p * d * x.dtype.itemsize
    )

    out = pl.pallas_call(
        _ffn_kernel,
        out_shape=jax.ShapeDtypeStruct((rows_p, d), x.dtype),
        grid_spec=pltpu.PrefetchScalarGridSpec(
            num_scalar_prefetch=0,
            grid=(n_row, n_ff),
            in_specs=[
                pl.BlockSpec((tm, d), lambda i, j: (i, 0)),        # x rows
                pl.BlockSpec((d, ff_chunk), lambda i, j: (0, j)),  # W1 slice
                pl.BlockSpec((1, ff_chunk), lambda i, j: (0, j)),  # b1 slice
                pl.BlockSpec((ff_chunk, d), lambda i, j: (j, 0)),  # W2 slice
                pl.BlockSpec((1, d), lambda i, j: (0, 0)),         # b2
                pl.BlockSpec((1, d), lambda i, j: (0, 0)),         # gamma
                pl.BlockSpec((1, d), lambda i, j: (0, 0)),         # beta
            ],
            out_specs=pl.BlockSpec((tm, d), lambda i, j: (i, 0)),
            scratch_shapes=[pltpu.VMEM((tm, d), jnp.float32)],     # f32 acc
        ),
        compiler_params=pltpu.CompilerParams(
            dimension_semantics=("parallel", "arbitrary"),
            vmem_limit_bytes=vmem_limit_bytes),
        cost_estimate=pl.CostEstimate(
            flops=flops, transcendentals=rows_p,
            bytes_accessed=bytes_accessed),
    )(x2, w1, b1_2, w2, b2_2, g2, be2)

    return out[:rows].reshape(B, T, d)


def ffn_reference(x, w1, b1, w2, b2, gamma, beta):
    xf = x.astype(jnp.float32)
    h = jnp.maximum(xf @ w1 + b1, 0.0)
    y = h @ w2 + b2
    z = xf + y
    mean = jnp.mean(z, axis=-1, keepdims=True)
    var = jnp.mean((z - mean) ** 2, axis=-1, keepdims=True)
    zn = (z - mean) * jax.lax.rsqrt(var + 1e-5)
    return (zn * gamma + beta).astype(x.dtype)


if __name__ == "__main__":
    # Small demo shapes; d_model=128 keeps the output lane-dense (d % 128 == 0).
    B, T, d_model = 2, 8, 128
    d_ff = 4 * d_model

    key = jax.random.PRNGKey(0)
    kx, k1, kb1, k2, kb2 = jax.random.split(key, 5)

    x = jax.random.normal(kx, (B, T, d_model), dtype=jnp.float32)
    # masks / lengths are unused by the forward pass (kept for API parity).
    masks = jnp.ones((B, T), dtype=jnp.float32)
    lengths = jnp.full((B,), T, dtype=jnp.int32)

    # Deterministic parameter init (uniform, like nn.Linear's default scale).
    lim1 = 1.0 / (d_model ** 0.5)
    lim2 = 1.0 / (d_ff ** 0.5)
    w1 = jax.random.uniform(k1, (d_model, d_ff), minval=-lim1, maxval=lim1)
    b1 = jax.random.uniform(kb1, (d_ff,), minval=-lim1, maxval=lim1)
    w2 = jax.random.uniform(k2, (d_ff, d_model), minval=-lim2, maxval=lim2)
    b2 = jax.random.uniform(kb2, (d_model,), minval=-lim2, maxval=lim2)
    gamma = jnp.ones((d_model,), dtype=jnp.float32)   # LayerNorm weight
    beta = jnp.zeros((d_model,), dtype=jnp.float32)   # LayerNorm bias

    out = ffn_pallas(x, w1, b1, w2, b2, gamma, beta, masks, lengths)
    out = jax.block_until_ready(out)

    ref = ffn_reference(x, w1, b1, w2, b2, gamma, beta)
    assert jnp.allclose(out, ref, atol=1e-4, rtol=1e-4), "mismatch vs reference"

    print("KERNEL_OK")
</pallas_src>

<mosaic_0001>
module attributes {stable_mosaic.version = 11 : i64} {
  func.func @_ffn_kernel(%arg0: i32, %arg1: i32, %arg2: memref<16x128xf32, #tpu.memory_space<vmem>>, %arg3: memref<128x512xf32, #tpu.memory_space<vmem>>, %arg4: memref<1x512xf32, #tpu.memory_space<vmem>>, %arg5: memref<512x128xf32, #tpu.memory_space<vmem>>, %arg6: memref<1x128xf32, #tpu.memory_space<vmem>>, %arg7: memref<1x128xf32, #tpu.memory_space<vmem>>, %arg8: memref<1x128xf32, #tpu.memory_space<vmem>>, %arg9: memref<16x128xf32, #tpu.memory_space<vmem>>, %arg10: memref<16x128xf32, #tpu.memory_space<vmem>>) attributes {dimension_semantics = [#tpu.dimension_semantics<parallel>, #tpu.dimension_semantics<arbitrary>], iteration_bounds = array<i64: 1, 1>, scalar_prefetch = 0 : i64, scratch_operands = 1 : i64, tpu.core_type = #tpu.core_type<tc>, window_params = [{transform_indices = @transform_0, window_bounds = array<i64: 16, 128>}, {transform_indices = @transform_1, window_bounds = array<i64: 128, 512>}, {transform_indices = @transform_2, window_bounds = array<i64: 1, 512>}, {transform_indices = @transform_3, window_bounds = array<i64: 512, 128>}, {pipeline_mode = #tpu.pipeline_mode<synchronous>, transform_indices = @transform_4, window_bounds = array<i64: 1, 128>}, {pipeline_mode = #tpu.pipeline_mode<synchronous>, transform_indices = @transform_5, window_bounds = array<i64: 1, 128>}, {pipeline_mode = #tpu.pipeline_mode<synchronous>, transform_indices = @transform_6, window_bounds = array<i64: 1, 128>}, {transform_indices = @transform_7, window_bounds = array<i64: 16, 128>}]} {
    %c0_i32 = arith.constant 0 : i32
    %0 = arith.cmpi eq, %arg1, %c0_i32 : i32
    %1 = arith.extui %0 : i1 to i32
    %c0_i32_0 = arith.constant 0 : i32
    %2 = arith.cmpi ne, %1, %c0_i32_0 : i32
    scf.if %2 {
      %cst_16 = arith.constant 0.000000e+00 : f32
      %19 = vector.broadcast %cst_16 : f32 to vector<16x128xf32>
      %c0_17 = arith.constant 0 : index
      %c0_18 = arith.constant 0 : index
      %20 = vector.load %arg10[%c0_17, %c0_18] : memref<16x128xf32, #tpu.memory_space<vmem>>, vector<16x128xf32>
      tpu.vector_store %arg10[%c0_17, %c0_18], %19 {strides = array<i32>} : memref<16x128xf32, #tpu.memory_space<vmem>>, vector<16x128xf32>,
    } else {
    }
    %c0 = arith.constant 0 : index
    %c0_1 = arith.constant 0 : index
    %3 = vector.load %arg2[%c0, %c0_1] : memref<16x128xf32, #tpu.memory_space<vmem>>, vector<16x128xf32>
    %c0_2 = arith.constant 0 : index
    %c0_3 = arith.constant 0 : index
    %4 = vector.load %arg3[%c0_2, %c0_3] : memref<128x512xf32, #tpu.memory_space<vmem>>, vector<128x512xf32>
    %cst = arith.constant dense<0.000000e+00> : vector<16x512xf32>
    %5 = tpu.matmul %3, %4, %cst {dimension_numbers = #tpu.dot_dimension_numbers<[1], [0], [0], [1], [0, 0, 1, 1], [], []>} : vector<16x128xf32>, vector<128x512xf32>, vector<16x512xf32> -> vector<16x512xf32>
    %c0_4 = arith.constant 0 : index
    %c0_5 = arith.constant 0 : index
    %6 = vector.load %arg4[%c0_4, %c0_5] : memref<1x512xf32, #tpu.memory_space<vmem>>, vector<1x512xf32>
    %7 = vector.broadcast %6 : vector<1x512xf32> to vector<16x512xf32>
    %8 = arith.addf %5, %7 : vector<16x512xf32>
    %cst_6 = arith.constant 0.000000e+00 : f32
    %9 = vector.broadcast %cst_6 : f32 to vector<16x512xf32>
    %10 = arith.maximumf %8, %9 : vector<16x512xf32>
    %c0_7 = arith.constant 0 : index
    %c0_8 = arith.constant 0 : index
    %11 = vector.load %arg10[%c0_7, %c0_8] : memref<16x128xf32, #tpu.memory_space<vmem>>, vector<16x128xf32>
    %c0_9 = arith.constant 0 : index
    %c0_10 = arith.constant 0 : index
    %12 = vector.load %arg5[%c0_9, %c0_10] : memref<512x128xf32, #tpu.memory_space<vmem>>, vector<512x128xf32>
    %cst_11 = arith.constant dense<0.000000e+00> : vector<16x128xf32>
    %13 = tpu.matmul %10, %12, %cst_11 {dimension_numbers = #tpu.dot_dimension_numbers<[1], [0], [0], [1], [0, 0, 1, 1], [], []>} : vector<16x512xf32>, vector<512x128xf32>, vector<16x128xf32> -> vector<16x128xf32>
    %14 = arith.addf %11, %13 : vector<16x128xf32>
    %c0_12 = arith.constant 0 : index
    %c0_13 = arith.constant 0 : index
    %15 = vector.load %arg10[%c0_12, %c0_13] : memref<16x128xf32, #tpu.memory_space<vmem>>, vector<16x128xf32>
    tpu.vector_store %arg10[%c0_12, %c0_13], %14 {strides = array<i32>} : memref<16x128xf32, #tpu.memory_space<vmem>>, vector<16x128xf32>,
    %c0_i32_14 = arith.constant 0 : i32
    %16 = arith.cmpi eq, %arg1, %c0_i32_14 : i32
    %17 = arith.extui %16 : i1 to i32
    %c0_i32_15 = arith.constant 0 : i32
    %18 = arith.cmpi ne, %17, %c0_i32_15 : i32
    scf.if %18 {
      %c0_16 = arith.constant 0 : index
      %c0_17 = arith.constant 0 : index
      %19 = vector.load %arg10[%c0_16, %c0_17] : memref<16x128xf32, #tpu.memory_space<vmem>>, vector<16x128xf32>
      %c0_18 = arith.constant 0 : index
      %c0_19 = arith.constant 0 : index
      %20 = vector.load %arg6[%c0_18, %c0_19] : memref<1x128xf32, #tpu.memory_space<vmem>>, vector<1x128xf32>
      %21 = vector.broadcast %20 : vector<1x128xf32> to vector<16x128xf32>
      %22 = arith.addf %19, %21 : vector<16x128xf32>
      %c0_20 = arith.constant 0 : index
      %c0_21 = arith.constant 0 : index
      %23 = vector.load %arg2[%c0_20, %c0_21] : memref<16x128xf32, #tpu.memory_space<vmem>>, vector<16x128xf32>
      %24 = arith.addf %23, %22 : vector<16x128xf32>
      %cst_22 = arith.constant dense<0.000000e+00> : vector<16xf32>
      %25 = vector.multi_reduction <add>, %24, %cst_22 [1] : vector<16x128xf32> to vector<16xf32>
      %26 = vector.shape_cast %25 : vector<16xf32> to vector<16x1xf32>
      %cst_23 = arith.constant 1.280000e+02 : f32
      %27 = vector.broadcast %cst_23 : f32 to vector<16x1xf32>
      %28 = arith.divf %26, %27 : vector<16x1xf32>
      %29 = vector.broadcast %28 : vector<16x1xf32> to vector<16x128xf32>
      %30 = arith.subf %24, %29 : vector<16x128xf32>
      %31 = arith.mulf %30, %30 : vector<16x128xf32>
      %cst_24 = arith.constant dense<0.000000e+00> : vector<16xf32>
      %32 = vector.multi_reduction <add>, %31, %cst_24 [1] : vector<16x128xf32> to vector<16xf32>
      %33 = vector.shape_cast %32 : vector<16xf32> to vector<16x1xf32>
      %cst_25 = arith.constant 1.280000e+02 : f32
      %34 = vector.broadcast %cst_25 : f32 to vector<16x1xf32>
      %35 = arith.divf %33, %34 : vector<16x1xf32>
      %cst_26 = arith.constant 9.99999974E-6 : f32
      %36 = vector.broadcast %cst_26 : f32 to vector<16x1xf32>
      %37 = arith.addf %35, %36 : vector<16x1xf32>
      %38 = math.rsqrt %37 : vector<16x1xf32>
      %39 = vector.broadcast %38 : vector<16x1xf32> to vector<16x128xf32>
      %40 = arith.mulf %30, %39 : vector<16x128xf32>
      %c0_27 = arith.constant 0 : index
      %c0_28 = arith.constant 0 : index
      %41 = vector.load %arg7[%c0_27, %c0_28] : memref<1x128xf32, #tpu.memory_space<vmem>>, vector<1x128xf32>
      %42 = vector.broadcast %41 : vector<1x128xf32> to vector<16x128xf32>
      %43 = arith.mulf %40, %42 : vector<16x128xf32>
      %c0_29 = arith.constant 0 : index
      %c0_30 = arith.constant 0 : index
      %44 = vector.load %arg8[%c0_29, %c0_30] : memref<1x128xf32, #tpu.memory_space<vmem>>, vector<1x128xf32>
      %45 = vector.broadcast %44 : vector<1x128xf32> to vector<16x128xf32>
      %46 = arith.addf %43, %45 : vector<16x128xf32>
      %c0_31 = arith.constant 0 : index
      %c0_32 = arith.constant 0 : index
      %47 = vector.load %arg9[%c0_31, %c0_32] : memref<16x128xf32, #tpu.memory_space<vmem>>, vector<16x128xf32>
      tpu.vector_store %arg9[%c0_31, %c0_32], %46 {strides = array<i32>} : memref<16x128xf32, #tpu.memory_space<vmem>>, vector<16x128xf32>,
    } else {
    }
    return
  }
  func.func @transform_0(%arg0: i32, %arg1: i32) -> (i32, i32) {
    %c0_i32 = arith.constant 0 : i32
    %c0_i32_0 = arith.constant 0 : i32
    return %arg0, %c0_i32 : i32, i32
  }
  func.func @transform_1(%arg0: i32, %arg1: i32) -> (i32, i32) {
    %c0_i32 = arith.constant 0 : i32
    %c0_i32_0 = arith.constant 0 : i32
    return %c0_i32, %arg1 : i32, i32
  }
  func.func @transform_2(%arg0: i32, %arg1: i32) -> (i32, i32) {
    %c0_i32 = arith.constant 0 : i32
    %c0_i32_0 = arith.constant 0 : i32
    return %c0_i32, %arg1 : i32, i32
  }
  func.func @transform_3(%arg0: i32, %arg1: i32) -> (i32, i32) {
    %c0_i32 = arith.constant 0 : i32
    %c0_i32_0 = arith.constant 0 : i32
    return %arg1, %c0_i32 : i32, i32
  }
  func.func @transform_4(%arg0: i32, %arg1: i32) -> (i32, i32) {
    %c0_i32 = arith.constant 0 : i32
    %c0_i32_0 = arith.constant 0 : i32
    %c0_i32_1 = arith.constant 0 : i32
    return %c0_i32, %c0_i32_0 : i32, i32
  }
  func.func @transform_5(%arg0: i32, %arg1: i32) -> (i32, i32) {
    %c0_i32 = arith.constant 0 : i32
    %c0_i32_0 = arith.constant 0 : i32
    %c0_i32_1 = arith.constant 0 : i32
    return %c0_i32, %c0_i32_0 : i32, i32
  }
  func.func @transform_6(%arg0: i32, %arg1: i32) -> (i32, i32) {
    %c0_i32 = arith.constant 0 : i32
    %c0_i32_0 = arith.constant 0 : i32
    %c0_i32_1 = arith.constant 0 : i32
    return %c0_i32, %c0_i32_0 : i32, i32
  }
  func.func @transform_7(%arg0: i32, %arg1: i32) -> (i32, i32) {
    %c0_i32 = arith.constant 0 : i32
    %c0_i32_0 = arith.constant 0 : i32
    return %arg0, %c0_i32 : i32, i32
  }
}

</mosaic_0001>

<llo_original>
// kernel: tpu_custom_call.1
$region0: #{tpu_custom_call.1}
  #allocation0 [shape = 'u32[]', space=smem, size = 0x4, offset = 0x4, fixed_abs, tag = 'smem constant byte address 0x4 - core index']
  #allocation1 [shape = 'u32[144,128]{1,0:T(1,128)}', space=vmem, size = 0x12000, scoped, tag = 'internal scratch']
  #allocation2 [shape = 'f32[16,128]{1,0:T(8,128)}', space=vmem, size = 0x2000, scoped, tag = 'scratch operand']
  %s0 = inlined_call_operand.hbm [shape: f32[16,128], index: 0, kind: input, shape index: {}]
  %s1 = inlined_call_operand.hbm [shape: f32[128,512], index: 1, kind: input, shape index: {}]
  %s2 = inlined_call_operand.vmem [shape: f32[1,512], index: 2, kind: input, shape index: {}]
  %s3 = inlined_call_operand.hbm [shape: f32[512,128], index: 3, kind: input, shape index: {}]
  %s4 = inlined_call_operand.vmem [shape: f32[1,128], index: 4, kind: input, shape index: {}]
  %s5 = inlined_call_operand.vmem [shape: f32[1,128], index: 5, kind: input, shape index: {}]
  %s6 = inlined_call_operand.vmem [shape: f32[1,128], index: 6, kind: input, shape index: {}]
  %s7 = inlined_call_operand.hbm [shape: f32[16,128], index: 7, kind: output, shape index: {}]
  %s8 = sld [smem:[#allocation0]]
  $region58: #{tpu_custom_call.1} parent=0
    _
  %s10 = ssub.s32 1, %s8
  %s11 = scalar_select 0, %s10, %s8
  $region1: #{tpu_custom_call.1} parent=0
    #allocation3 [shape = 'u8[8192]{0}', space=vmem, size = 0x2000, scoped, tag = 'input window, operand 0, single buffered']
    #allocation4 [shape = 's32[1]{0}', space=sflag, size = 0x4, scoped, tag = 'scoped memory for tpu_custom_call.1']
    #allocation5 [shape = 's32[1]{0}', space=sflag, size = 0x4, scoped, tag = 'scoped memory for tpu_custom_call.1']
    #allocation6 [shape = 'u8[262144]{0}', space=vmem, size = 0x40000, scoped, tag = 'input window, operand 1, single buffered']
    #allocation7 [shape = 's32[1]{0}', space=sflag, size = 0x4, scoped, tag = 'scoped memory for tpu_custom_call.1']
    #allocation8 [shape = 'u8[262144]{0}', space=vmem, size = 0x40000, scoped, tag = 'input window, operand 3, single buffered']
    #allocation9 [shape = 'u8[8192]{0}', space=vmem, size = 0x2000, scoped, tag = 'output window, operand 0, single buffered']
    %12 = vsyncpa [#allocation4], 0
    %13 = vsyncpa [#allocation7], 0
    %14 = vsyncpa [#allocation5], 0
    // Predicated region
    $region2: #{tpu_custom_call.1} parent=1 // pred_check
      _
    $region3: #{tpu_custom_call.1} parent=1 // pred_check_branch
      %16 = sbr.rel (0) target = $region5
    $region4: #{tpu_custom_call.1} parent=1 // pred_region
      %s18 = ssub.s32 256, 256
      %19 = vsyncadd [#allocation4], %s18
      %s20 = sshll.u32 [#allocation3], 4
      %s21 = int_to_ptr.vmem [resolvable:$true] %s20
      %26 = dma.hbm_to_vmem [thread:$0]  %s0, 256, %s21, [#allocation4], 128, 128, 8
    $region5: #{tpu_custom_call.1} parent=1 // pred_fallthru
      _
    // Predicated region
    $region6: #{tpu_custom_call.1} parent=1 // pred_check
      _
    $region7: #{tpu_custom_call.1} parent=1 // pred_check_branch
      %28 = sbr.rel (0) target = $region9
    $region8: #{tpu_custom_call.1} parent=1 // pred_region
      %s30 = ssub.s32 8192, 8192
      %31 = vsyncadd [#allocation7], %s30
      %s32 = sshll.u32 [#allocation6], 4
      %s33 = int_to_ptr.vmem [resolvable:$true] %s32
      %38 = dma.hbm_to_vmem [thread:$0]  %s1, 8192, %s33, [#allocation7], 512, 512, 32
    $region9: #{tpu_custom_call.1} parent=1 // pred_fallthru
      _
    // Predicated region
    $region10: #{tpu_custom_call.1} parent=1 // pred_check
      _
    $region11: #{tpu_custom_call.1} parent=1 // pred_check_branch
      %40 = sbr.rel (0) target = $region13
    $region12: #{tpu_custom_call.1} parent=1 // pred_region
      _
    $region13: #{tpu_custom_call.1} parent=1 // pred_fallthru
      _
    // Predicated region
    $region14: #{tpu_custom_call.1} parent=1 // pred_check
      _
    $region15: #{tpu_custom_call.1} parent=1 // pred_check_branch
      %42 = sbr.rel (0) target = $region17
    $region16: #{tpu_custom_call.1} parent=1 // pred_region
      %s44 = ssub.s32 8192, 8192
      %45 = vsyncadd [#allocation7], %s44
      %s46 = sshll.u32 [#allocation8], 4
      %s47 = int_to_ptr.vmem [resolvable:$true] %s46
      %52 = dma.hbm_to_vmem [thread:$0]  %s3, 8192, %s47, [#allocation7], 128, 128, 8
    $region17: #{tpu_custom_call.1} parent=1 // pred_fallthru
      _
    // Predicated region
    $region18: #{tpu_custom_call.1} parent=1 // pred_check
      _
    $region19: #{tpu_custom_call.1} parent=1 // pred_check_branch
      %54 = sbr.rel (0) target = $region21
    $region20: #{tpu_custom_call.1} parent=1 // pred_region
      _
    $region21: #{tpu_custom_call.1} parent=1 // pred_fallthru
      _
    // Predicated region
    $region22: #{tpu_custom_call.1} parent=1 // pred_check
      _
    $region23: #{tpu_custom_call.1} parent=1 // pred_check_branch
      %56 = sbr.rel (0) target = $region25
    $region24: #{tpu_custom_call.1} parent=1 // pred_region
      _
    $region25: #{tpu_custom_call.1} parent=1 // pred_fallthru
      _
    // Predicated region
    $region26: #{tpu_custom_call.1} parent=1 // pred_check
      _
    $region27: #{tpu_custom_call.1} parent=1 // pred_check_branch
      %58 = sbr.rel (0) target = $region29
    $region28: #{tpu_custom_call.1} parent=1 // pred_region
      _
    $region29: #{tpu_custom_call.1} parent=1 // pred_fallthru
      _
    // Predicated region
    $region30: #{tpu_custom_call.1} parent=1 // pred_check
      _
    $region31: #{tpu_custom_call.1} parent=1 // pred_check_branch
      %60 = sbr.rel (0) target = $region33
    $region32: #{tpu_custom_call.1} parent=1 // pred_region
      %61 = dma.done [#allocation4], 256
    $region33: #{tpu_custom_call.1} parent=1 // pred_fallthru
      _
    // Predicated region
    $region34: #{tpu_custom_call.1} parent=1 // pred_check
      _
    $region35: #{tpu_custom_call.1} parent=1 // pred_check_branch
      %63 = sbr.rel (0) target = $region37
    $region36: #{tpu_custom_call.1} parent=1 // pred_region
      %64 = dma.done [#allocation7], 8192
    $region37: #{tpu_custom_call.1} parent=1 // pred_fallthru
      _
    // Predicated region
    $region38: #{tpu_custom_call.1} parent=1 // pred_check
      _
    $region39: #{tpu_custom_call.1} parent=1 // pred_check_branch
      %66 = sbr.rel (0) target = $region41
    $region40: #{tpu_custom_call.1} parent=1 // pred_region
      %67 = dma.done [#allocation7], 8192
    $region41: #{tpu_custom_call.1} parent=1 // pred_fallthru
      _
    %p68 = scmp.eq.s32.totalorder 0, 0
    // Predicated region
    $region42: #{tpu_custom_call.1} parent=1 // pred_check
      %p69 = pneg %p68
    $region43: #{tpu_custom_call.1} parent=1 // pred_check_branch
      %71 = sbr.rel (%p69) target = $region45
    $region44: #{tpu_custom_call.1} parent=1 // pred_region
      %72 = vst [vmem:[#allocation2] sm:$0xff] 0.0
      %73 = vst [vmem:[#allocation2 + $0x8] sm:$0xff] 0.0
    $region45: #{tpu_custom_call.1} parent=1 // pred_fallthru
      _
    %v74 = vld [vmem:[#allocation3] sm:$0xff]
    %v75 = vld [vmem:[#allocation3 + $0x8] sm:$0xff]
    %v76 = vld [vmem:[#allocation6] sm:$0xff]
    %v77 = vld [vmem:[#allocation6 + $0x8] sm:$0xff]
    %v78 = vld [vmem:[#allocation6 + $0x10] sm:$0xff]
    %v79 = vld [vmem:[#allocation6 + $0x18] sm:$0xff]
    %v80 = vld [vmem:[#allocation6 + $0x20] sm:$0xff]
    %v81 = vld [vmem:[#allocation6 + $0x28] sm:$0xff]
    %v82 = vld [vmem:[#allocation6 + $0x30] sm:$0xff]
    %v83 = vld [vmem:[#allocation6 + $0x38] sm:$0xff]
    %v84 = vld [vmem:[#allocation6 + $0x40] sm:$0xff]
    %v85 = vld [vmem:[#allocation6 + $0x48] sm:$0xff]
    %v86 = vld [vmem:[#allocation6 + $0x50] sm:$0xff]
    %v87 = vld [vmem:[#allocation6 + $0x58] sm:$0xff]
    %v88 = vld [vmem:[#allocation6 + $0x60] sm:$0xff]
    %v89 = vld [vmem:[#allocation6 + $0x68] sm:$0xff]
    %v90 = vld [vmem:[#allocation6 + $0x70] sm:$0xff]
    %v91 = vld [vmem:[#allocation6 + $0x78] sm:$0xff]
    %v92 = vld [vmem:[#allocation6 + $0x80] sm:$0xff]
    %v93 = vld [vmem:[#allocation6 + $0x88] sm:$0xff]
    %v94 = vld [vmem:[#allocation6 + $0x90] sm:$0xff]
    %v95 = vld [vmem:[#allocation6 + $0x98] sm:$0xff]
    %v96 = vld [vmem:[#allocation6 + $0xa0] sm:$0xff]
    %v97 = vld [vmem:[#allocation6 + $0xa8] sm:$0xff]
    %v98 = vld [vmem:[#allocation6 + $0xb0] sm:$0xff]
    %v99 = vld [vmem:[#allocation6 + $0xb8] sm:$0xff]
    %v100 = vld [vmem:[#allocation6 + $0xc0] sm:$0xff]
    %v101 = vld [vmem:[#allocation6 + $0xc8] sm:$0xff]
    %v102 = vld [vmem:[#allocation6 + $0xd0] sm:$0xff]
    %v103 = vld [vmem:[#allocation6 + $0xd8] sm:$0xff]
    %v104 = vld [vmem:[#allocation6 + $0xe0] sm:$0xff]
    %v105 = vld [vmem:[#allocation6 + $0xe8] sm:$0xff]
    %v106 = vld [vmem:[#allocation6 + $0xf0] sm:$0xff]
    %v107 = vld [vmem:[#allocation6 + $0xf8] sm:$0xff]
    %v108 = vld [vmem:[#allocation6 + $0x100] sm:$0xff]
    %v109 = vld [vmem:[#allocation6 + $0x108] sm:$0xff]
    %v110 = vld [vmem:[#allocation6 + $0x110] sm:$0xff]
    %v111 = vld [vmem:[#allocation6 + $0x118] sm:$0xff]
    %v112 = vld [vmem:[#allocation6 + $0x120] sm:$0xff]
    %v113 = vld [vmem:[#allocation6 + $0x128] sm:$0xff]
    %v114 = vld [vmem:[#allocation6 + $0x130] sm:$0xff]
    %v115 = vld [vmem:[#allocation6 + $0x138] sm:$0xff]
    %v116 = vld [vmem:[#allocation6 + $0x140] sm:$0xff]
    %v117 = vld [vmem:[#allocation6 + $0x148] sm:$0xff]
    %v118 = vld [vmem:[#allocation6 + $0x150] sm:$0xff]
    %v119 = vld [vmem:[#allocation6 + $0x158] sm:$0xff]
    %v120 = vld [vmem:[#allocation6 + $0x160] sm:$0xff]
    %v121 = vld [vmem:[#allocation6 + $0x168] sm:$0xff]
    %v122 = vld [vmem:[#allocation6 + $0x170] sm:$0xff]
    %v123 = vld [vmem:[#allocation6 + $0x178] sm:$0xff]
    %v124 = vld [vmem:[#allocation6 + $0x180] sm:$0xff]
    %v125 = vld [vmem:[#allocation6 + $0x188] sm:$0xff]
    %v126 = vld [vmem:[#allocation6 + $0x190] sm:$0xff]
    %v127 = vld [vmem:[#allocation6 + $0x198] sm:$0xff]
    %v128 = vld [vmem:[#allocation6 + $0x1a0] sm:$0xff]
    %v129 = vld [vmem:[#allocation6 + $0x1a8] sm:$0xff]
    %v130 = vld [vmem:[#allocation6 + $0x1b0] sm:$0xff]
    %v131 = vld [vmem:[#allocation6 + $0x1b8] sm:$0xff]
    %v132 = vld [vmem:[#allocation6 + $0x1c0] sm:$0xff]
    %v133 = vld [vmem:[#allocation6 + $0x1c8] sm:$0xff]
    %v134 = vld [vmem:[#allocation6 + $0x1d0] sm:$0xff]
    %v135 = vld [vmem:[#allocation6 + $0x1d8] sm:$0xff]
    %v136 = vld [vmem:[#allocation6 + $0x1e0] sm:$0xff]
    %v137 = vld [vmem:[#allocation6 + $0x1e8] sm:$0xff]
    %v138 = vld [vmem:[#allocation6 + $0x1f0] sm:$0xff]
    %v139 = vld [vmem:[#allocation6 + $0x1f8] sm:$0xff]
    %v140 = vld [vmem:[%s2] sm:$0xf]
    %v142 = vlaneseq
    %v143 = vshrl.u32 %v142, 7
    %v144 = vsub.s32 0, %v143
    %v145 = vrot.slane %v140, %v144
    %v146 = vlaneseq
    %v147 = vshrl.u32 %v146, 7
    %v148 = vsub.s32 1, %v147
    %v149 = vrot.slane %v140, %v148
    %v150 = vlaneseq
    %v151 = vshrl.u32 %v150, 7
    %v152 = vsub.s32 2, %v151
    %v153 = vrot.slane %v140, %v152
    %v154 = vlaneseq
    %v155 = vshrl.u32 %v154, 7
    %v156 = vsub.s32 3, %v155
    %v157 = vrot.slane %v140, %v156
    %162 = vmatprep.subr.mxu0 %v77
    %163 = vmatpush1.msra.mxu0 %v76
    %164 = vmatprep.subr.mxu0 %v81
    %165 = vmatpush1.msra.mxu0 %v80
    %166 = vmatprep.subr.mxu0 %v85
    %167 = vmatpush1.msra.mxu0 %v84
    %168 = vmatprep.subr.mxu0 %v89
    %169 = vmatpush1.msra.mxu0 %v88
    %170 = vmatprep.subr.mxu0 %v93
    %171 = vmatpush1.msra.mxu0 %v92
    %172 = vmatprep.subr.mxu0 %v97
    %173 = vmatpush1.msra.mxu0 %v96
    %174 = vmatprep.subr.mxu0 %v101
    %175 = vmatpush1.msra.mxu0 %v100
    %176 = vmatprep.subr.mxu0 %v105
    %177 = vmatpush1.msra.mxu0 %v104
    %178 = vmatprep.subr.mxu0 %v109
    %179 = vmatpush1.msra.mxu0 %v108
    %180 = vmatprep.subr.mxu0 %v113
    %181 = vmatpush1.msra.mxu0 %v112
    %182 = vmatprep.subr.mxu0 %v117
    %183 = vmatpush1.msra.mxu0 %v116
    %184 = vmatprep.subr.mxu0 %v121
    %185 = vmatpush1.msra.mxu0 %v120
    %186 = vmatprep.subr.mxu0 %v125
    %187 = vmatpush1.msra.mxu0 %v124
    %188 = vmatprep.subr.mxu0 %v129
    %189 = vmatpush1.msra.mxu0 %v128
    %190 = vmatprep.subr.mxu0 %v133
    %191 = vmatpush1.msra.mxu0 %v132
    %192 = vmatprep.subr.mxu0 %v137
    %193 = vmatpush1.msra.mxu0 %v136
    %194 = vmatprep.subr.mxu0 0.0
    %195 = vmatpush1.msra.mxu0 0.0
    %196 = vmatprep.subr.mxu0 0.0
    %197 = vmatpush1.msra.mxu0 0.0
    %198 = vmatprep.subr.mxu0 0.0
    %199 = vmatpush1.msra.mxu0 0.0
    %200 = vmatprep.subr.mxu0 0.0
    %201 = vmatpush1.msra.mxu0 0.0
    %202 = vmatprep.subr.mxu0 0.0
    %203 = vmatpush1.msra.mxu0 0.0
    %204 = vmatprep.subr.mxu0 0.0
    %205 = vmatpush1.msra.mxu0 0.0
    %206 = vmatprep.subr.mxu0 0.0
    %207 = vmatpush1.msra.mxu0 0.0
    %208 = vmatprep.subr.mxu0 0.0
    %209 = vmatpush1.msra.mxu0 0.0
    %210 = vmatprep.subr.mxu0 0.0
    %211 = vmatpush1.msra.mxu0 0.0
    %212 = vmatprep.subr.mxu0 0.0
    %213 = vmatpush1.msra.mxu0 0.0
    %214 = vmatprep.subr.mxu0 0.0
    %215 = vmatpush1.msra.mxu0 0.0
    %216 = vmatprep.subr.mxu0 0.0
    %217 = vmatpush1.msra.mxu0 0.0
    %218 = vmatprep.subr.mxu0 0.0
    %219 = vmatpush1.msra.mxu0 0.0
    %220 = vmatprep.subr.mxu0 0.0
    %221 = vmatpush1.msra.mxu0 0.0
    %222 = vmatprep.subr.mxu0 0.0
    %223 = vmatpush1.msra.mxu0 0.0
    %224 = vmatprep.subr.mxu0 0.0
    %225 = vmatpush1.msra.mxu0 0.0
    %226 = vmatprep.mubr.f32.mxu0 0.0
    %227 = vmatmul.mubr.f32.gmra.mrb[0].mxu0 %v74
    %v228 = vpop.f32.mrb[0].mxu0
    %v229 = vadd.f32 %v145, %v228
    %v230 = vpop.f32.mrb[0].mxu0
    %v231 = vadd.f32 %v149, %v230
    %232 = vmatprep.mubr.f32.mxu0 0.0
    %233 = vmatmul.mubr.f32.gmra.mrb[0].mxu0 %v75
    %v234 = vpop.f32.mrb[0].mxu0
    %v235 = vadd.f32 %v145, %v234
    %v236 = vpop.f32.mrb[0].mxu0
    %v237 = vadd.f32 %v149, %v236
    %238 = vdwg.mxu0
    %239 = vmatprep.subr.mxu0 %v79
    %240 = vmatpush1.msra.mxu0 %v78
    %241 = vmatprep.subr.mxu0 %v83
    %242 = vmatpush1.msra.mxu0 %v82
    %243 = vmatprep.subr.mxu0 %v87
    %244 = vmatpush1.msra.mxu0 %v86
    %245 = vmatprep.subr.mxu0 %v91
    %246 = vmatpush1.msra.mxu0 %v90
    %247 = vmatprep.subr.mxu0 %v95
    %248 = vmatpush1.msra.mxu0 %v94
    %249 = vmatprep.subr.mxu0 %v99
    %250 = vmatpush1.msra.mxu0 %v98
    %251 = vmatprep.subr.mxu0 %v103
    %252 = vmatpush1.msra.mxu0 %v102
    %253 = vmatprep.subr.mxu0 %v107
    %254 = vmatpush1.msra.mxu0 %v106
    %255 = vmatprep.subr.mxu0 %v111
    %256 = vmatpush1.msra.mxu0 %v110
    %257 = vmatprep.subr.mxu0 %v115
    %258 = vmatpush1.msra.mxu0 %v114
    %259 = vmatprep.subr.mxu0 %v119
    %260 = vmatpush1.msra.mxu0 %v118
    %261 = vmatprep.subr.mxu0 %v123
    %262 = vmatpush1.msra.mxu0 %v122
    %263 = vmatprep.subr.mxu0 %v127
    %264 = vmatpush1.msra.mxu0 %v126
    %265 = vmatprep.subr.mxu0 %v131
    %266 = vmatpush1.msra.mxu0 %v130
    %267 = vmatprep.subr.mxu0 %v135
    %268 = vmatpush1.msra.mxu0 %v134
    %269 = vmatprep.subr.mxu0 %v139
    %270 = vmatpush1.msra.mxu0 %v138
    %271 = vmatprep.subr.mxu0 0.0
    %272 = vmatpush1.msra.mxu0 0.0
    %273 = vmatprep.subr.mxu0 0.0
    %274 = vmatpush1.msra.mxu0 0.0
    %275 = vmatprep.subr.mxu0 0.0
    %276 = vmatpush1.msra.mxu0 0.0
    %277 = vmatprep.subr.mxu0 0.0
    %278 = vmatpush1.msra.mxu0 0.0
    %279 = vmatprep.subr.mxu0 0.0
    %280 = vmatpush1.msra.mxu0 0.0
    %281 = vmatprep.subr.mxu0 0.0
    %282 = vmatpush1.msra.mxu0 0.0
    %283 = vmatprep.subr.mxu0 0.0
    %284 = vmatpush1.msra.mxu0 0.0
    %285 = vmatprep.subr.mxu0 0.0
    %286 = vmatpush1.msra.mxu0 0.0
    %287 = vmatprep.subr.mxu0 0.0
    %288 = vmatpush1.msra.mxu0 0.0
    %289 = vmatprep.subr.mxu0 0.0
    %290 = vmatpush1.msra.mxu0 0.0
    %291 = vmatprep.subr.mxu0 0.0
    %292 = vmatpush1.msra.mxu0 0.0
    %293 = vmatprep.subr.mxu0 0.0
    %294 = vmatpush1.msra.mxu0 0.0
    %295 = vmatprep.subr.mxu0 0.0
    %296 = vmatpush1.msra.mxu0 0.0
    %297 = vmatprep.subr.mxu0 0.0
    %298 = vmatpush1.msra.mxu0 0.0
    %299 = vmatprep.subr.mxu0 0.0
    %300 = vmatpush1.msra.mxu0 0.0
    %301 = vmatprep.subr.mxu0 0.0
    %302 = vmatpush1.msra.mxu0 0.0
    %303 = vmatprep.mubr.f32.mxu0 0.0
    %304 = vmatmul.mubr.f32.gmra.mrb[0].mxu0 %v74
    %v305 = vpop.f32.mrb[0].mxu0
    %v306 = vadd.f32 %v153, %v305
    %v307 = vpop.f32.mrb[0].mxu0
    %v308 = vadd.f32 %v157, %v307
    %309 = vmatprep.mubr.f32.mxu0 0.0
    %310 = vmatmul.mubr.f32.gmra.mrb[0].mxu0 %v75
    %v311 = vpop.f32.mrb[0].mxu0
    %v312 = vadd.f32 %v153, %v311
    %v313 = vpop.f32.mrb[0].mxu0
    %v314 = vadd.f32 %v157, %v313
    %315 = vdwg.mxu0
    %v316 = vmax.f32 %v229, 0.0
    %v317 = vmax.f32 %v231, 0.0
    %v318 = vmax.f32 %v306, 0.0
    %v319 = vmax.f32 %v308, 0.0
    %v320 = vmax.f32 %v235, 0.0
    %v321 = vmax.f32 %v237, 0.0
    %v322 = vmax.f32 %v312, 0.0
    %v323 = vmax.f32 %v314, 0.0
    %v324 = vld [vmem:[#allocation2] sm:$0xff]
    %v325 = vld [vmem:[#allocation2 + $0x8] sm:$0xff]
    %v326 = vld [vmem:[#allocation8] sm:$0xff]
    %v327 = vld [vmem:[#allocation8 + $0x8] sm:$0xff]
    %v328 = vld [vmem:[#allocation8 + $0x10] sm:$0xff]
    %v329 = vld [vmem:[#allocation8 + $0x18] sm:$0xff]
    %v330 = vld [vmem:[#allocation8 + $0x20] sm:$0xff]
    %v331 = vld [vmem:[#allocation8 + $0x28] sm:$0xff]
    %v332 = vld [vmem:[#allocation8 + $0x30] sm:$0xff]
    %v333 = vld [vmem:[#allocation8 + $0x38] sm:$0xff]
    %v334 = vld [vmem:[#allocation8 + $0x40] sm:$0xff]
    %v335 = vld [vmem:[#allocation8 + $0x48] sm:$0xff]
    %v336 = vld [vmem:[#allocation8 + $0x50] sm:$0xff]
    %v337 = vld [vmem:[#allocation8 + $0x58] sm:$0xff]
    %v338 = vld [vmem:[#allocation8 + $0x60] sm:$0xff]
    %v339 = vld [vmem:[#allocation8 + $0x68] sm:$0xff]
    %v340 = vld [vmem:[#allocation8 + $0x70] sm:$0xff]
    %v341 = vld [vmem:[#allocation8 + $0x78] sm:$0xff]
    %v342 = vld [vmem:[#allocation8 + $0x80] sm:$0xff]
    %v343 = vld [vmem:[#allocation8 + $0x88] sm:$0xff]
    %v344 = vld [vmem:[#allocation8 + $0x90] sm:$0xff]
    %v345 = vld [vmem:[#allocation8 + $0x98] sm:$0xff]
    %v346 = vld [vmem:[#allocation8 + $0xa0] sm:$0xff]
    %v347 = vld [vmem:[#allocation8 + $0xa8] sm:$0xff]
    %v348 = vld [vmem:[#allocation8 + $0xb0] sm:$0xff]
    %v349 = vld [vmem:[#allocation8 + $0xb8] sm:$0xff]
    %v350 = vld [vmem:[#allocation8 + $0xc0] sm:$0xff]
    %v351 = vld [vmem:[#allocation8 + $0xc8] sm:$0xff]
    %v352 = vld [vmem:[#allocation8 + $0xd0] sm:$0xff]
    %v353 = vld [vmem:[#allocation8 + $0xd8] sm:$0xff]
    %v354 = vld [vmem:[#allocation8 + $0xe0] sm:$0xff]
    %v355 = vld [vmem:[#allocation8 + $0xe8] sm:$0xff]
    %v356 = vld [vmem:[#allocation8 + $0xf0] sm:$0xff]
    %v357 = vld [vmem:[#allocation8 + $0xf8] sm:$0xff]
    %v358 = vld [vmem:[#allocation8 + $0x100] sm:$0xff]
    %v359 = vld [vmem:[#allocation8 + $0x108] sm:$0xff]
    %v360 = vld [vmem:[#allocation8 + $0x110] sm:$0xff]
    %v361 = vld [vmem:[#allocation8 + $0x118] sm:$0xff]
    %v362 = vld [vmem:[#allocation8 + $0x120] sm:$0xff]
    %v363 = vld [vmem:[#allocation8 + $0x128] sm:$0xff]
    %v364 = vld [vmem:[#allocation8 + $0x130] sm:$0xff]
    %v365 = vld [vmem:[#allocation8 + $0x138] sm:$0xff]
    %v366 = vld [vmem:[#allocation8 + $0x140] sm:$0xff]
    %v367 = vld [vmem:[#allocation8 + $0x148] sm:$0xff]
    %v368 = vld [vmem:[#allocation8 + $0x150] sm:$0xff]
    %v369 = vld [vmem:[#allocation8 + $0x158] sm:$0xff]
    %v370 = vld [vmem:[#allocation8 + $0x160] sm:$0xff]
    %v371 = vld [vmem:[#allocation8 + $0x168] sm:$0xff]
    %v372 = vld [vmem:[#allocation8 + $0x170] sm:$0xff]
    %v373 = vld [vmem:[#allocation8 + $0x178] sm:$0xff]
    %v374 = vld [vmem:[#allocation8 + $0x180] sm:$0xff]
    %v375 = vld [vmem:[#allocation8 + $0x188] sm:$0xff]
    %v376 = vld [vmem:[#allocation8 + $0x190] sm:$0xff]
    %v377 = vld [vmem:[#allocation8 + $0x198] sm:$0xff]
    %v378 = vld [vmem:[#allocation8 + $0x1a0] sm:$0xff]
    %v379 = vld [vmem:[#allocation8 + $0x1a8] sm:$0xff]
    %v380 = vld [vmem:[#allocation8 + $0x1b0] sm:$0xff]
    %v381 = vld [vmem:[#allocation8 + $0x1b8] sm:$0xff]
    %v382 = vld [vmem:[#allocation8 + $0x1c0] sm:$0xff]
    %v383 = vld [vmem:[#allocation8 + $0x1c8] sm:$0xff]
    %v384 = vld [vmem:[#allocation8 + $0x1d0] sm:$0xff]
    %v385 = vld [vmem:[#allocation8 + $0x1d8] sm:$0xff]
    %v386 = vld [vmem:[#allocation8 + $0x1e0] sm:$0xff]
    %v387 = vld [vmem:[#allocation8 + $0x1e8] sm:$0xff]
    %v388 = vld [vmem:[#allocation8 + $0x1f0] sm:$0xff]
    %v389 = vld [vmem:[#allocation8 + $0x1f8] sm:$0xff]
    %390 = vmatprep.subr.mxu0 0.0
    %391 = vmatpush1.msra.mxu0 %v326
    %392 = vmatprep.subr.mxu0 0.0
    %393 = vmatpush1.msra.mxu0 %v327
    %394 = vmatprep.subr.mxu0 0.0
    %395 = vmatpush1.msra.mxu0 %v328
    %396 = vmatprep.subr.mxu0 0.0
    %397 = vmatpush1.msra.mxu0 %v329
    %398 = vmatprep.subr.mxu0 0.0
    %399 = vmatpush1.msra.mxu0 %v330
    %400 = vmatprep.subr.mxu0 0.0
    %401 = vmatpush1.msra.mxu0 %v331
    %402 = vmatprep.subr.mxu0 0.0
    %403 = vmatpush1.msra.mxu0 %v332
    %404 = vmatprep.subr.mxu0 0.0
    %405 = vmatpush1.msra.mxu0 %v333
    %406 = vmatprep.subr.mxu0 0.0
    %407 = vmatpush1.msra.mxu0 %v334
    %408 = vmatprep.subr.mxu0 0.0
    %409 = vmatpush1.msra.mxu0 %v335
    %410 = vmatprep.subr.mxu0 0.0
    %411 = vmatpush1.msra.mxu0 %v336
    %412 = vmatprep.subr.mxu0 0.0
    %413 = vmatpush1.msra.mxu0 %v337
    %414 = vmatprep.subr.mxu0 0.0
    %415 = vmatpush1.msra.mxu0 %v338
    %416 = vmatprep.subr.mxu0 0.0
    %417 = vmatpush1.msra.mxu0 %v339
    %418 = vmatprep.subr.mxu0 0.0
    %419 = vmatpush1.msra.mxu0 %v340
    %420 = vmatprep.subr.mxu0 0.0
    %421 = vmatpush1.msra.mxu0 %v341
    %422 = vmatprep.subr.mxu0 0.0
    %423 = vmatpush1.msra.mxu0 %v342
    %424 = vmatprep.subr.mxu0 0.0
    %425 = vmatpush1.msra.mxu0 %v343
    %426 = vmatprep.subr.mxu0 0.0
    %427 = vmatpush1.msra.mxu0 %v344
    %428 = vmatprep.subr.mxu0 0.0
    %429 = vmatpush1.msra.mxu0 %v345
    %430 = vmatprep.subr.mxu0 0.0
    %431 = vmatpush1.msra.mxu0 %v346
    %432 = vmatprep.subr.mxu0 0.0
    %433 = vmatpush1.msra.mxu0 %v347
    %434 = vmatprep.subr.mxu0 0.0
    %435 = vmatpush1.msra.mxu0 %v348
    %436 = vmatprep.subr.mxu0 0.0
    %437 = vmatpush1.msra.mxu0 %v349
    %438 = vmatprep.subr.mxu0 0.0
    %439 = vmatpush1.msra.mxu0 %v350
    %440 = vmatprep.subr.mxu0 0.0
    %441 = vmatpush1.msra.mxu0 %v351
    %442 = vmatprep.subr.mxu0 0.0
    %443 = vmatpush1.msra.mxu0 %v352
    %444 = vmatprep.subr.mxu0 0.0
    %445 = vmatpush1.msra.mxu0 %v353
    %446 = vmatprep.subr.mxu0 0.0
    %447 = vmatpush1.msra.mxu0 %v354
    %448 = vmatprep.subr.mxu0 0.0
    %449 = vmatpush1.msra.mxu0 %v355
    %450 = vmatprep.subr.mxu0 0.0
    %451 = vmatpush1.msra.mxu0 %v356
    %452 = vmatprep.subr.mxu0 0.0
    %453 = vmatpush1.msra.mxu0 %v357
    %454 = vmatprep.mubr.f32.mxu0 %v317
    %455 = vmatmul.mubr.f32.gmra.mrb[0].mxu0 %v316
    %v456 = vpop.f32.mrb[0].mxu0
    %v457 = vadd.f32 0.0, %v456
    %v458 = vpop.f32.mrb[0].mxu0
    %459 = vmatprep.mubr.f32.mxu0 %v321
    %460 = vmatmul.mubr.f32.gmra.mrb[0].mxu0 %v320
    %v461 = vpop.f32.mrb[0].mxu0
    %v462 = vadd.f32 0.0, %v461
    %v463 = vpop.f32.mrb[0].mxu0
    %464 = vdwg.mxu0
    %465 = vmatprep.subr.mxu0 0.0
    %466 = vmatpush1.msra.mxu0 %v358
    %467 = vmatprep.subr.mxu0 0.0
    %468 = vmatpush1.msra.mxu0 %v359
    %469 = vmatprep.subr.mxu0 0.0
    %470 = vmatpush1.msra.mxu0 %v360
    %471 = vmatprep.subr.mxu0 0.0
    %472 = vmatpush1.msra.mxu0 %v361
    %473 = vmatprep.subr.mxu0 0.0
    %474 = vmatpush1.msra.mxu0 %v362
    %475 = vmatprep.subr.mxu0 0.0
    %476 = vmatpush1.msra.mxu0 %v363
    %477 = vmatprep.subr.mxu0 0.0
    %478 = vmatpush1.msra.mxu0 %v364
    %479 = vmatprep.subr.mxu0 0.0
    %480 = vmatpush1.msra.mxu0 %v365
    %481 = vmatprep.subr.mxu0 0.0
    %482 = vmatpush1.msra.mxu0 %v366
    %483 = vmatprep.subr.mxu0 0.0
    %484 = vmatpush1.msra.mxu0 %v367
    %485 = vmatprep.subr.mxu0 0.0
    %486 = vmatpush1.msra.mxu0 %v368
    %487 = vmatprep.subr.mxu0 0.0
    %488 = vmatpush1.msra.mxu0 %v369
    %489 = vmatprep.subr.mxu0 0.0
    %490 = vmatpush1.msra.mxu0 %v370
    %491 = vmatprep.subr.mxu0 0.0
    %492 = vmatpush1.msra.mxu0 %v371
    %493 = vmatprep.subr.mxu0 0.0
    %494 = vmatpush1.msra.mxu0 %v372
    %495 = vmatprep.subr.mxu0 0.0
    %496 = vmatpush1.msra.mxu0 %v373
    %497 = vmatprep.subr.mxu0 0.0
    %498 = vmatpush1.msra.mxu0 %v374
    %499 = vmatprep.subr.mxu0 0.0
    %500 = vmatpush1.msra.mxu0 %v375
    %501 = vmatprep.subr.mxu0 0.0
    %502 = vmatpush1.msra.mxu0 %v376
    %503 = vmatprep.subr.mxu0 0.0
    %504 = vmatpush1.msra.mxu0 %v377
    %505 = vmatprep.subr.mxu0 0.0
    %506 = vmatpush1.msra.mxu0 %v378
    %507 = vmatprep.subr.mxu0 0.0
    %508 = vmatpush1.msra.mxu0 %v379
    %509 = vmatprep.subr.mxu0 0.0
    %510 = vmatpush1.msra.mxu0 %v380
    %511 = vmatprep.subr.mxu0 0.0
    %512 = vmatpush1.msra.mxu0 %v381
    %513 = vmatprep.subr.mxu0 0.0
    %514 = vmatpush1.msra.mxu0 %v382
    %515 = vmatprep.subr.mxu0 0.0
    %516 = vmatpush1.msra.mxu0 %v383
    %517 = vmatprep.subr.mxu0 0.0
    %518 = vmatpush1.msra.mxu0 %v384
    %519 = vmatprep.subr.mxu0 0.0
    %520 = vmatpush1.msra.mxu0 %v385
    %521 = vmatprep.subr.mxu0 0.0
    %522 = vmatpush1.msra.mxu0 %v386
    %523 = vmatprep.subr.mxu0 0.0
    %524 = vmatpush1.msra.mxu0 %v387
    %525 = vmatprep.subr.mxu0 0.0
    %526 = vmatpush1.msra.mxu0 %v388
    %527 = vmatprep.subr.mxu0 0.0
    %528 = vmatpush1.msra.mxu0 %v389
    %529 = vmatprep.mubr.f32.mxu0 %v319
    %530 = vmatmul.mubr.f32.gmra.mrb[0].mxu0 %v318
    %v531 = vpop.f32.mrb[0].mxu0
    %v532 = vadd.f32 %v457, %v531
    %v533 = vpop.f32.mrb[0].mxu0
    %534 = vmatprep.mubr.f32.mxu0 %v323
    %535 = vmatmul.mubr.f32.gmra.mrb[0].mxu0 %v322
    %v536 = vpop.f32.mrb[0].mxu0
    %v537 = vadd.f32 %v462, %v536
    %v538 = vpop.f32.mrb[0].mxu0
    %539 = vdwg.mxu0
    %v540 = vadd.f32 %v324, %v532
    %v541 = vadd.f32 %v325, %v537
    %542 = vst [vmem:[#allocation2] sm:$0xff] %v540
    %543 = vst [vmem:[#allocation2 + $0x8] sm:$0xff] %v541
    // Predicated region
    $region46: #{tpu_custom_call.1} parent=1 // pred_check
      %p544 = pneg %p68
    $region47: #{tpu_custom_call.1} parent=1 // pred_check_branch
      %546 = sbr.rel (%p544) target = $region49
    $region48: #{tpu_custom_call.1} parent=1 // pred_region
      %v547 = vld [vmem:[#allocation2] sm:$0xff]
      %v548 = vld [vmem:[#allocation2 + $0x8] sm:$0xff]
      %v549 = vld [vmem:[%s4] sm:$0x1]
      %v551 = vlaneseq
      %v552 = vshrl.u32 %v551, 7
      %v553 = vsub.s32 0, %v552
      %v554 = vrot.slane %v549, %v553
      %v556 = vadd.f32 %v547, %v554
      %v557 = vadd.f32 %v548, %v554
      %v558 = vld [vmem:[#allocation3] sm:$0xff]
      %v559 = vld [vmem:[#allocation3 + $0x8] sm:$0xff]
      %v560 = vadd.f32 %v558, %v556
      %v561 = vadd.f32 %v559, %v557
      %562 = vadd.xlane.f32.xlu0 %v560
      %v563 = vpop.xlane.xlu0 %562
      %564 = vadd.xlane.f32.xlu0 %v561
      %v565 = vpop.xlane.xlu0 %564
      %v566 = vrcp.pop 128.0
      %v567 = vmul.f32 %v563, %v566
      %v568 = vmul.f32 %v565, %v566
      %v569 = vsub.f32 %v560, %v567
      %v570 = vsub.f32 %v561, %v568
      %v571 = vmul.f32 %v569, %v569
      %v572 = vmul.f32 %v570, %v570
      %573 = vadd.xlane.f32.xlu0 %v571
      %v574 = vpop.xlane.xlu0 %573
      %575 = vadd.xlane.f32.xlu0 %v572
      %v576 = vpop.xlane.xlu0 %575
      %v577 = vmul.f32 %v574, %v566
      %v578 = vmul.f32 %v576, %v566
      %v579 = vadd.f32 %v577, 1e-05
      %v580 = vadd.f32 %v578, 1e-05
      %v581 = vrsqrt.pop %v579
      %v582 = vrsqrt.pop %v580
      %v583 = vmul.f32 %v569, %v581
      %v584 = vmul.f32 %v570, %v582
      %v585 = vld [vmem:[%s5] sm:$0x1]
      %v587 = vlaneseq
      %v588 = vshrl.u32 %v587, 7
      %v589 = vsub.s32 0, %v588
      %v590 = vrot.slane %v585, %v589
      %v592 = vmul.f32 %v583, %v590
      %v593 = vmul.f32 %v584, %v590
      %v594 = vld [vmem:[%s6] sm:$0x1]
      %v596 = vlaneseq
      %v597 = vshrl.u32 %v596, 7
      %v598 = vsub.s32 0, %v597
      %v599 = vrot.slane %v594, %v598
      %v601 = vadd.f32 %v592, %v599
      %v602 = vadd.f32 %v593, %v599
      %603 = vst [vmem:[#allocation9] sm:$0xff] %v601
      %604 = vst [vmem:[#allocation9 + $0x8] sm:$0xff] %v602
    $region49: #{tpu_custom_call.1} parent=1 // pred_fallthru
      _
    // Predicated region
    $region50: #{tpu_custom_call.1} parent=1 // pred_check
      _
    $region51: #{tpu_custom_call.1} parent=1 // pred_check_branch
      %606 = sbr.rel (0) target = $region53
    $region52: #{tpu_custom_call.1} parent=1 // pred_region
      %s608 = ssub.s32 256, 256
      %609 = vsyncadd [#allocation5], %s608
      %s610 = sshll.u32 [#allocation9], 4
      %s611 = int_to_ptr.vmem [resolvable:$true] %s610
      %616 = dma.vmem_to_hbm [thread:$0]  %s611, 256, %s7, [#allocation5], 128, 128, 8
    $region53: #{tpu_custom_call.1} parent=1 // pred_fallthru
      _
    // Predicated region
    $region54: #{tpu_custom_call.1} parent=1 // pred_check
      _
    $region55: #{tpu_custom_call.1} parent=1 // pred_check_branch
      %618 = sbr.rel (0) target = $region57
    $region56: #{tpu_custom_call.1} parent=1 // pred_region
      %619 = dma.done [#allocation5], 256
    $region57: #{tpu_custom_call.1} parent=1 // pred_fallthru
      _
    %620 = vsyncpa [#allocation4], 1
    %621 = vsyncpa [#allocation7], 1
    %622 = vsyncpa [#allocation5], 1

</llo_original>
